<compile_context>
chip_gen: v6e
topology: v6e:2x2x1
jax: 0.10.0
libtpu: 0.0.40
codegen_flags: <defaults>
</compile_context>

<pallas_src>
import jax
import jax.numpy as jnp
from jax.experimental import pallas as pl
from jax.experimental.pallas import tpu as pltpu


def _softmax_dim0_kernel(x_ref, o_ref):
    # exp (EUP), reduce over axis 0 (sublanes, XLU), one reciprocal per lane (EUP),
    # then a cheap VPU broadcast-multiply instead of a per-element divide.
    x = x_ref[...].astype(jnp.float32)
    x_exp = jnp.exp(x)
    partition = jnp.sum(x_exp, axis=0, keepdims=True)        # (1, tn), keepdims like torch
    inv = pl.reciprocal(partition, approx=False)              # exact: keeps 1e-6 tolerance
    o_ref[...] = (x_exp * inv).astype(o_ref.dtype)


def my_softmax(x, *, max_tn=8192, vmem_budget_bytes=24 * 1024 * 1024):
    """Softmax over axis 0 with no max subtraction, matching the PyTorch module exactly."""
    orig_shape = x.shape
    orig_dtype = x.dtype

    # Flatten everything after dim 0 so the reduction axis is the sublane axis.
    d0 = orig_shape[0]
    rest = 1
    for d in orig_shape[1:]:
        rest *= d
    x2 = x.reshape(d0, rest)

    itemsize = jnp.dtype(orig_dtype).itemsize
    # Per-lane VMEM cost of one grid step:
    #   double-buffered in + out blocks  (2 * 2 * d0 * itemsize)
    #   + fp32 temps (upcast + x_exp)    (2 * d0 * 4)
    per_lane_bytes = d0 * (4 * itemsize + 2 * 4)

    # Guard against a reduction axis so long that even a 128-lane block blows VMEM.
    if per_lane_bytes * 128 > 48 * 1024 * 1024:
        # TODO(synk): add reduction-axis (two-pass) tiling for very large d0 (v7x 64 MiB VMEM).
        raise ValueError(
            f"Reduction axis d0={d0} too large for a single (d0, 128) block in VMEM.")

    # Largest 128-aligned lane tile that fits the budget, capped at max_tn.
    budget_tn = max(128, (vmem_budget_bytes // per_lane_bytes) // 128 * 128)
    tn = int(min(max_tn, budget_tn))

    # Lane-align, then pad the lane axis up to a multiple of the tile width.
    rest_p = ((rest + 127) // 128) * 128
    tn = min(tn, rest_p)
    rest_p = ((rest_p + tn - 1) // tn) * tn
    if rest_p != rest:
        # Zero padding is safe: padded lanes are independent columns (exp(0)=1, finite)
        # and are sliced away below.
        x2 = jnp.pad(x2, ((0, 0), (0, rest_p - rest)))

    block_bytes = d0 * tn * itemsize
    temps_bytes = 2 * d0 * tn * 4
    vmem_limit = int(min(64 * 1024 * 1024,
                         max(32 * 1024 * 1024,
                             4 * block_bytes + temps_bytes + (8 << 20))))

    grid = (rest_p // tn,)
    out2 = pl.pallas_call(
        _softmax_dim0_kernel,
        out_shape=jax.ShapeDtypeStruct((d0, rest_p), orig_dtype),
        grid=grid,
        in_specs=[pl.BlockSpec((d0, tn), lambda j: (0, j))],
        out_specs=pl.BlockSpec((d0, tn), lambda j: (0, j)),
        compiler_params=pltpu.CompilerParams(
            dimension_semantics=("parallel",),
            vmem_limit_bytes=vmem_limit),
    )(x2)

    if rest_p != rest:
        out2 = out2[:, :rest]
    return out2.reshape(orig_shape)


def _ref_softmax_dim0(x):
    # Pure-JAX reference of the exact PyTorch semantics (exp / sum over dim 0).
    x_exp = jnp.exp(x)
    return x_exp / jnp.sum(x_exp, axis=0, keepdims=True)


if __name__ == "__main__":
    key = jax.random.PRNGKey(0)

    # Primary shape consistent with the module: seq=8 (reduction axis), hidden=128.
    x = jax.random.normal(key, (8, 128), dtype=jnp.float32)
    out = jax.block_until_ready(my_softmax(x))
    ref = _ref_softmax_dim0(x)
    assert out.shape == x.shape and out.dtype == x.dtype
    assert jnp.allclose(out, ref, atol=1e-6, rtol=1e-6)

    # Ragged / higher-rank case: exercises the flatten + lane-padding path.
    key2 = jax.random.PRNGKey(0)
    y = jax.random.normal(key2, (8, 4, 50), dtype=jnp.float32)
    out_y = jax.block_until_ready(my_softmax(y))
    ref_y = _ref_softmax_dim0(y)
    assert out_y.shape == y.shape and out_y.dtype == y.dtype
    assert jnp.allclose(out_y, ref_y, atol=1e-6, rtol=1e-6)

    # bf16 path: upcast-in-kernel, store back to bf16.
    z = jax.random.normal(jax.random.PRNGKey(0), (8, 256), dtype=jnp.bfloat16)
    out_z = jax.block_until_ready(my_softmax(z))
    ref_z = _ref_softmax_dim0(z.astype(jnp.float32)).astype(jnp.bfloat16)
    assert out_z.shape == z.shape and out_z.dtype == z.dtype
    assert jnp.allclose(out_z.astype(jnp.float32), ref_z.astype(jnp.float32),
                        atol=2e-2, rtol=2e-2)

    print("KERNEL_OK")
</pallas_src>

<mosaic_0001>
module attributes {stable_mosaic.version = 11 : i64} {
  func.func @_softmax_dim0_kernel(%arg0: i32, %arg1: memref<8x128xf32, #tpu.memory_space<vmem>>, %arg2: memref<8x128xf32, #tpu.memory_space<vmem>>) attributes {dimension_semantics = [#tpu.dimension_semantics<parallel>], iteration_bounds = array<i64: 1>, scalar_prefetch = 0 : i64, scratch_operands = 0 : i64, tpu.core_type = #tpu.core_type<tc>, window_params = [{transform_indices = @transform_0, window_bounds = array<i64: 8, 128>}, {transform_indices = @transform_1, window_bounds = array<i64: 8, 128>}]} {
    %c0 = arith.constant 0 : index
    %c0_0 = arith.constant 0 : index
    %0 = vector.load %arg1[%c0, %c0_0] : memref<8x128xf32, #tpu.memory_space<vmem>>, vector<8x128xf32>
    %1 = math.exp %0 : vector<8x128xf32>
    %cst = arith.constant dense<0.000000e+00> : vector<128xf32>
    %2 = vector.multi_reduction <add>, %1, %cst [0] : vector<8x128xf32> to vector<128xf32>
    %3 = vector.shape_cast %2 : vector<128xf32> to vector<1x128xf32>
    %4 = tpu.reciprocal %3 : vector<1x128xf32> -> vector<1x128xf32>
    %5 = vector.broadcast %4 : vector<1x128xf32> to vector<8x128xf32>
    %6 = arith.mulf %1, %5 : vector<8x128xf32>
    %c0_1 = arith.constant 0 : index
    %c0_2 = arith.constant 0 : index
    %7 = vector.load %arg2[%c0_1, %c0_2] : memref<8x128xf32, #tpu.memory_space<vmem>>, vector<8x128xf32>
    tpu.vector_store %arg2[%c0_1, %c0_2], %6 {strides = array<i32>} : memref<8x128xf32, #tpu.memory_space<vmem>>, vector<8x128xf32>,
    return
  }
  func.func @transform_0(%arg0: i32) -> (i32, i32) {
    %c0_i32 = arith.constant 0 : i32
    %c0_i32_0 = arith.constant 0 : i32
    return %c0_i32, %arg0 : i32, i32
  }
  func.func @transform_1(%arg0: i32) -> (i32, i32) {
    %c0_i32 = arith.constant 0 : i32
    %c0_i32_0 = arith.constant 0 : i32
    return %c0_i32, %arg0 : i32, i32
  }
}

</mosaic_0001>

<llo_original>
// kernel: tpu_custom_call.1
$region0: #{tpu_custom_call.1}
  #allocation0 [shape = 'u32[]', space=smem, size = 0x4, offset = 0x4, fixed_abs, tag = 'smem constant byte address 0x4 - core index']
  #allocation1 [shape = 'u32[144,128]{1,0:T(1,128)}', space=vmem, size = 0x12000, scoped, tag = 'internal scratch']
  %s0 = inlined_call_operand.hbm [shape: f32[8,128], index: 0, kind: input, shape index: {}]
  %s1 = inlined_call_operand.hbm [shape: f32[8,128], index: 1, kind: output, shape index: {}]
  %s2 = sld [smem:[#allocation0]]
  $region18: #{tpu_custom_call.1} parent=0
    _
  %s4 = ssub.s32 1, %s2
  %s5 = scalar_select 0, %s4, %s2
  $region1: #{tpu_custom_call.1} parent=0
    #allocation2 [shape = 'u8[4096]{0}', space=vmem, size = 0x1000, scoped, tag = 'input window, operand 0, single buffered']
    #allocation3 [shape = 's32[1]{0}', space=sflag, size = 0x4, scoped, tag = 'scoped memory for tpu_custom_call.1']
    #allocation4 [shape = 's32[1]{0}', space=sflag, size = 0x4, scoped, tag = 'scoped memory for tpu_custom_call.1']
    #allocation5 [shape = 'u8[4096]{0}', space=vmem, size = 0x1000, scoped, tag = 'output window, operand 0, single buffered']
    %6 = vsyncpa [#allocation3], 0
    %7 = vsyncpa [#allocation4], 0
    // Predicated region
    $region2: #{tpu_custom_call.1} parent=1 // pred_check
      _
    $region3: #{tpu_custom_call.1} parent=1 // pred_check_branch
      %9 = sbr.rel (0) target = $region5
    $region4: #{tpu_custom_call.1} parent=1 // pred_region
      %s11 = ssub.s32 128, 128
      %12 = vsyncadd [#allocation3], %s11
      %s14 = sshll.u32 [#allocation2], 4
      %s15 = int_to_ptr.vmem [resolvable:$true] %s14
      %17 = dma.hbm_to_vmem [thread:$0]  %s0, 128, %s15, [#allocation3]
    $region5: #{tpu_custom_call.1} parent=1 // pred_fallthru
      _
    // Predicated region
    $region6: #{tpu_custom_call.1} parent=1 // pred_check
      _
    $region7: #{tpu_custom_call.1} parent=1 // pred_check_branch
      %19 = sbr.rel (0) target = $region9
    $region8: #{tpu_custom_call.1} parent=1 // pred_region
      %20 = dma.done [#allocation3], 128
    $region9: #{tpu_custom_call.1} parent=1 // pred_fallthru
      _
    %v21 = vld [vmem:[#allocation2] sm:$0xff]
    %v22 = vmul.f32 %v21, 1.442695
    %v23 = vpow.pop %v22
    %v24 = vrot.slane %v23, 4
    %v25 = vadd.f32 %v23, %v24
    %v26 = vrot.slane %v25, 2
    %v27 = vadd.f32 %v25, %v26
    %v28 = vrot.slane %v27, 1
    %v29 = vadd.f32 %v27, %v28
    %v30 = vrcp.pop %v29
    %v31 = vmul.f32 %v23, %v30
    %32 = vst [vmem:[#allocation5] sm:$0xff] %v31
    // Predicated region
    $region10: #{tpu_custom_call.1} parent=1 // pred_check
      _
    $region11: #{tpu_custom_call.1} parent=1 // pred_check_branch
      %34 = sbr.rel (0) target = $region13
    $region12: #{tpu_custom_call.1} parent=1 // pred_region
      %s36 = ssub.s32 128, 128
      %37 = vsyncadd [#allocation4], %s36
      %s39 = sshll.u32 [#allocation5], 4
      %s40 = int_to_ptr.vmem [resolvable:$true] %s39
      %42 = dma.vmem_to_hbm [thread:$0]  %s40, 128, %s1, [#allocation4]
    $region13: #{tpu_custom_call.1} parent=1 // pred_fallthru
      _
    // Predicated region
    $region14: #{tpu_custom_call.1} parent=1 // pred_check
      _
    $region15: #{tpu_custom_call.1} parent=1 // pred_check_branch
      %44 = sbr.rel (0) target = $region17
    $region16: #{tpu_custom_call.1} parent=1 // pred_region
      %45 = dma.done [#allocation4], 128
    $region17: #{tpu_custom_call.1} parent=1 // pred_fallthru
      _
    %46 = vsyncpa [#allocation3], 1
    %47 = vsyncpa [#allocation4], 1

</llo_original>
